<compile_context>
chip_gen: v6e
topology: v6e:2x2x1
jax: 0.10.0
libtpu: 0.0.40
codegen_flags: <defaults>
</compile_context>

<pallas_src>
import jax
import jax.numpy as jnp
from jax.experimental import pallas as pl
from jax.experimental.pallas import tpu as pltpu


def _round_up(x, m):
    return ((x + m - 1) // m) * m


def mlp_kernel(x_ref, w1_ref, b1_ref, w2_ref, b2_ref, w3_ref, b3_ref,
               w4_ref, b4_ref, o_ref):
    # fc1 + ReLU  (bf16 operands on the MXU, fp32 accumulation)
    h = jnp.dot(x_ref[...], w1_ref[...], preferred_element_type=jnp.float32)
    h = jnp.maximum(h + b1_ref[...], 0.0)
    # fc2 + ReLU
    h = jnp.dot(h.astype(jnp.bfloat16), w2_ref[...], preferred_element_type=jnp.float32)
    h = jnp.maximum(h + b2_ref[...], 0.0)
    # fc3 + ReLU
    h = jnp.dot(h.astype(jnp.bfloat16), w3_ref[...], preferred_element_type=jnp.float32)
    h = jnp.maximum(h + b3_ref[...], 0.0)
    # fc4 (logits), fp32
    logits = jnp.dot(h.astype(jnp.bfloat16), w4_ref[...],
                     preferred_element_type=jnp.float32) + b4_ref[...]
    # log_softmax over the class (last) axis, fp32
    m = jnp.max(logits, axis=-1, keepdims=True)
    s = logits - m
    lse = jnp.log(jnp.sum(jnp.exp(s), axis=-1, keepdims=True))
    # NOTE: (tb, 10) store is a masked vst (lane dim < 128); negligible at these sizes.
    o_ref[...] = (s - lse).astype(o_ref.dtype)


def _estimate_vmem_bytes(tb, layer_dims, out_dim):
    """Rough per-call VMEM footprint: double-buffered tiles + VMEM-resident weights."""
    bf16, f32 = 2, 4
    w_bytes = sum(fi * fo for fi, fo in layer_dims) * bf16
    b_bytes = sum(fo for _, fo in layer_dims) * f32
    in_dim = layer_dims[0][0]
    x_bytes = 2 * tb * in_dim * bf16            # double-buffered activation tile
    o_bytes = 2 * tb * out_dim * f32            # double-buffered output tile
    tmp = tb * sum(fo for _, fo in layer_dims) * (f32 + bf16)   # in-kernel temporaries
    total = 2 * (w_bytes + b_bytes) + x_bytes + o_bytes + tmp
    # 2x headroom for compiler-internal scratch; clamp well below v7x's 64 MiB.
    return int(min(max(2 * total, 4 << 20), 32 << 20))


def mlp_net_forward(x, params, *, batch_tile=256):
    """x: (B, ...) flattened to (B, 784). Returns log-probabilities (B, 10) in fp32."""
    B = x.shape[0]
    (w1, b1), (w2, b2), (w3, b3), (w4, b4) = params
    in_dim, out_dim = w1.shape[0], w4.shape[1]
    layer_dims = [w.shape for w, _ in params]

    # bf16 MXU operands; biases stay fp32 (added to the fp32 accumulator in-kernel).
    x2d = x.reshape(B, -1).astype(jnp.bfloat16)     # glue: flatten, like x.view(B, -1)
    w1b, w2b, w3b, w4b = (w.astype(jnp.bfloat16) for w in (w1, w2, w3, w4))
    b1f, b2f, b3f, b4f = (b.astype(jnp.float32) for b in (b1, b2, b3, b4))

    # Batch tile: multiple of 256 (full MXU height on v6e/v7x, 2x128 on v5e) once the
    # batch is large; for tiny batches just round up to the bf16 sublane pack (16).
    tb = min(batch_tile, _round_up(B, 16))
    Bp = _round_up(B, tb)
    if Bp != B:
        x2d = jnp.pad(x2d, ((0, Bp - B), (0, 0)))

    grid = (Bp // tb,)
    act_spec = pl.BlockSpec((tb, in_dim), lambda i: (i, 0))
    out_spec = pl.BlockSpec((tb, out_dim), lambda i: (i, 0))
    # Constant index_map: weights/biases are DMA'd once and stay VMEM-resident.
    resident = lambda a: pl.BlockSpec(a.shape, lambda i: (0,) * a.ndim)

    args = (x2d, w1b, b1f, w2b, b2f, w3b, b3f, w4b, b4f)
    in_specs = [act_spec] + [resident(a) for a in args[1:]]

    out = pl.pallas_call(
        mlp_kernel,
        out_shape=jax.ShapeDtypeStruct((Bp, out_dim), jnp.float32),
        grid=grid,
        in_specs=in_specs,
        out_specs=out_spec,
        compiler_params=pltpu.CompilerParams(
            dimension_semantics=("parallel",),   # batch tiles shard across v7x cores
            vmem_limit_bytes=_estimate_vmem_bytes(tb, layer_dims, out_dim),
        ),
    )(*args)
    return out[:B]


def init_params(key, input_dim=784, h1=256, h2=128, h3=64, out_dim=10):
    """Deterministic PyTorch-style (uniform +/- 1/sqrt(fan_in)) init, stored as (in, out)."""
    dims = [(input_dim, h1), (h1, h2), (h2, h3), (h3, out_dim)]
    params = []
    for (fan_in, fan_out) in dims:
        key, kw, kb = jax.random.split(key, 3)
        bound = 1.0 / (fan_in ** 0.5)
        w = jax.random.uniform(kw, (fan_in, fan_out), jnp.float32, -bound, bound)
        b = jax.random.uniform(kb, (1, fan_out), jnp.float32, -bound, bound)
        params.append((w, b))
    return params


def mlp_net_reference(x, params):
    """Pure fp32 JAX reference (matches the PyTorch forward in eval mode)."""
    B = x.shape[0]
    h = x.reshape(B, -1).astype(jnp.float32)
    for i, (w, b) in enumerate(params):
        h = h @ w + b
        if i < len(params) - 1:
            h = jnp.maximum(h, 0.0)
    return jax.nn.log_softmax(h, axis=-1)


if __name__ == "__main__":
    # enable_dropout=False / eval-mode path (dropout is identity there).
    # TODO(synk): dropout branch (F.dropout in training mode) not implemented in-kernel.
    key = jax.random.PRNGKey(0)
    kx, kp = jax.random.split(key)
    x = jax.random.normal(kx, (8, 1, 28, 28), jnp.float32)  # MNIST-like NCHW input
    params = init_params(kp)

    out = mlp_net_forward(x, params)
    out = jax.block_until_ready(out)

    ref = mlp_net_reference(x, params)
    assert out.shape == (8, 10)
    # bf16 MXU operands (fp32 accumulation) -> loosened tolerance vs. fp32 reference.
    assert jnp.allclose(out, ref, atol=3e-2, rtol=3e-2), "mismatch vs. pure-JAX reference"
    print("KERNEL_OK")
</pallas_src>

<mosaic_0001>
module attributes {stable_mosaic.version = 11 : i64} {
  func.func @mlp_kernel(%arg0: i32, %arg1: memref<16x784xbf16, #tpu.memory_space<vmem>>, %arg2: memref<784x256xbf16, #tpu.memory_space<vmem>>, %arg3: memref<1x256xf32, #tpu.memory_space<vmem>>, %arg4: memref<256x128xbf16, #tpu.memory_space<vmem>>, %arg5: memref<1x128xf32, #tpu.memory_space<vmem>>, %arg6: memref<128x64xbf16, #tpu.memory_space<vmem>>, %arg7: memref<1x64xf32, #tpu.memory_space<vmem>>, %arg8: memref<64x10xbf16, #tpu.memory_space<vmem>>, %arg9: memref<1x10xf32, #tpu.memory_space<vmem>>, %arg10: memref<16x10xf32, #tpu.memory_space<vmem>>) attributes {dimension_semantics = [#tpu.dimension_semantics<parallel>], iteration_bounds = array<i64: 1>, scalar_prefetch = 0 : i64, scratch_operands = 0 : i64, tpu.core_type = #tpu.core_type<tc>, window_params = [{transform_indices = @transform_0, window_bounds = array<i64: 16, 784>}, {pipeline_mode = #tpu.pipeline_mode<synchronous>, transform_indices = @transform_1, window_bounds = array<i64: 784, 256>}, {pipeline_mode = #tpu.pipeline_mode<synchronous>, transform_indices = @transform_2, window_bounds = array<i64: 1, 256>}, {pipeline_mode = #tpu.pipeline_mode<synchronous>, transform_indices = @transform_3, window_bounds = array<i64: 256, 128>}, {pipeline_mode = #tpu.pipeline_mode<synchronous>, transform_indices = @transform_4, window_bounds = array<i64: 1, 128>}, {pipeline_mode = #tpu.pipeline_mode<synchronous>, transform_indices = @transform_5, window_bounds = array<i64: 128, 64>}, {pipeline_mode = #tpu.pipeline_mode<synchronous>, transform_indices = @transform_6, window_bounds = array<i64: 1, 64>}, {pipeline_mode = #tpu.pipeline_mode<synchronous>, transform_indices = @transform_7, window_bounds = array<i64: 64, 10>}, {pipeline_mode = #tpu.pipeline_mode<synchronous>, transform_indices = @transform_8, window_bounds = array<i64: 1, 10>}, {transform_indices = @transform_9, window_bounds = array<i64: 16, 10>}]} {
    %c0 = arith.constant 0 : index
    %c0_0 = arith.constant 0 : index
    %0 = vector.load %arg1[%c0, %c0_0] : memref<16x784xbf16, #tpu.memory_space<vmem>>, vector<16x784xbf16>
    %c0_1 = arith.constant 0 : index
    %c0_2 = arith.constant 0 : index
    %1 = vector.load %arg2[%c0_1, %c0_2] : memref<784x256xbf16, #tpu.memory_space<vmem>>, vector<784x256xbf16>
    %cst = arith.constant dense<0.000000e+00> : vector<16x256xf32>
    %2 = tpu.matmul %0, %1, %cst {dimension_numbers = #tpu.dot_dimension_numbers<[1], [0], [0], [1], [0, 0, 1, 1], [], []>} : vector<16x784xbf16>, vector<784x256xbf16>, vector<16x256xf32> -> vector<16x256xf32>
    %c0_3 = arith.constant 0 : index
    %c0_4 = arith.constant 0 : index
    %3 = vector.load %arg3[%c0_3, %c0_4] : memref<1x256xf32, #tpu.memory_space<vmem>>, vector<1x256xf32>
    %4 = vector.broadcast %3 : vector<1x256xf32> to vector<16x256xf32>
    %5 = arith.addf %2, %4 : vector<16x256xf32>
    %cst_5 = arith.constant 0.000000e+00 : f32
    %6 = vector.broadcast %cst_5 : f32 to vector<16x256xf32>
    %7 = arith.maximumf %5, %6 : vector<16x256xf32>
    %8 = arith.truncf %7 : vector<16x256xf32> to vector<16x256xbf16>
    %c0_6 = arith.constant 0 : index
    %c0_7 = arith.constant 0 : index
    %9 = vector.load %arg4[%c0_6, %c0_7] : memref<256x128xbf16, #tpu.memory_space<vmem>>, vector<256x128xbf16>
    %cst_8 = arith.constant dense<0.000000e+00> : vector<16x128xf32>
    %10 = tpu.matmul %8, %9, %cst_8 {dimension_numbers = #tpu.dot_dimension_numbers<[1], [0], [0], [1], [0, 0, 1, 1], [], []>} : vector<16x256xbf16>, vector<256x128xbf16>, vector<16x128xf32> -> vector<16x128xf32>
    %c0_9 = arith.constant 0 : index
    %c0_10 = arith.constant 0 : index
    %11 = vector.load %arg5[%c0_9, %c0_10] : memref<1x128xf32, #tpu.memory_space<vmem>>, vector<1x128xf32>
    %12 = vector.broadcast %11 : vector<1x128xf32> to vector<16x128xf32>
    %13 = arith.addf %10, %12 : vector<16x128xf32>
    %cst_11 = arith.constant 0.000000e+00 : f32
    %14 = vector.broadcast %cst_11 : f32 to vector<16x128xf32>
    %15 = arith.maximumf %13, %14 : vector<16x128xf32>
    %16 = arith.truncf %15 : vector<16x128xf32> to vector<16x128xbf16>
    %c0_12 = arith.constant 0 : index
    %c0_13 = arith.constant 0 : index
    %17 = vector.load %arg6[%c0_12, %c0_13] : memref<128x64xbf16, #tpu.memory_space<vmem>>, vector<128x64xbf16>
    %cst_14 = arith.constant dense<0.000000e+00> : vector<16x64xf32>
    %18 = tpu.matmul %16, %17, %cst_14 {dimension_numbers = #tpu.dot_dimension_numbers<[1], [0], [0], [1], [0, 0, 1, 1], [], []>} : vector<16x128xbf16>, vector<128x64xbf16>, vector<16x64xf32> -> vector<16x64xf32>
    %c0_15 = arith.constant 0 : index
    %c0_16 = arith.constant 0 : index
    %19 = vector.load %arg7[%c0_15, %c0_16] : memref<1x64xf32, #tpu.memory_space<vmem>>, vector<1x64xf32>
    %20 = vector.broadcast %19 : vector<1x64xf32> to vector<16x64xf32>
    %21 = arith.addf %18, %20 : vector<16x64xf32>
    %cst_17 = arith.constant 0.000000e+00 : f32
    %22 = vector.broadcast %cst_17 : f32 to vector<16x64xf32>
    %23 = arith.maximumf %21, %22 : vector<16x64xf32>
    %24 = arith.truncf %23 : vector<16x64xf32> to vector<16x64xbf16>
    %c0_18 = arith.constant 0 : index
    %c0_19 = arith.constant 0 : index
    %25 = vector.load %arg8[%c0_18, %c0_19] : memref<64x10xbf16, #tpu.memory_space<vmem>>, vector<64x10xbf16>
    %cst_20 = arith.constant dense<0.000000e+00> : vector<16x10xf32>
    %26 = tpu.matmul %24, %25, %cst_20 {dimension_numbers = #tpu.dot_dimension_numbers<[1], [0], [0], [1], [0, 0, 1, 1], [], []>} : vector<16x64xbf16>, vector<64x10xbf16>, vector<16x10xf32> -> vector<16x10xf32>
    %c0_21 = arith.constant 0 : index
    %c0_22 = arith.constant 0 : index
    %27 = vector.load %arg9[%c0_21, %c0_22] : memref<1x10xf32, #tpu.memory_space<vmem>>, vector<1x10xf32>
    %28 = vector.broadcast %27 : vector<1x10xf32> to vector<16x10xf32>
    %29 = arith.addf %26, %28 : vector<16x10xf32>
    %cst_23 = arith.constant dense<0xFF800000> : vector<16xf32>
    %30 = vector.multi_reduction <maximumf>, %29, %cst_23 [1] : vector<16x10xf32> to vector<16xf32>
    %31 = vector.shape_cast %30 : vector<16xf32> to vector<16x1xf32>
    %32 = vector.broadcast %31 : vector<16x1xf32> to vector<16x10xf32>
    %33 = arith.subf %29, %32 : vector<16x10xf32>
    %34 = math.exp %33 : vector<16x10xf32>
    %cst_24 = arith.constant dense<0.000000e+00> : vector<16xf32>
    %35 = vector.multi_reduction <add>, %34, %cst_24 [1] : vector<16x10xf32> to vector<16xf32>
    %36 = vector.shape_cast %35 : vector<16xf32> to vector<16x1xf32>
    %37 = math.log %36 : vector<16x1xf32>
    %38 = vector.broadcast %37 : vector<16x1xf32> to vector<16x10xf32>
    %39 = arith.subf %33, %38 : vector<16x10xf32>
    %c0_25 = arith.constant 0 : index
    %c0_26 = arith.constant 0 : index
    %40 = vector.load %arg10[%c0_25, %c0_26] : memref<16x10xf32, #tpu.memory_space<vmem>>, vector<16x10xf32>
    tpu.vector_store %arg10[%c0_25, %c0_26], %39 {strides = array<i32>} : memref<16x10xf32, #tpu.memory_space<vmem>>, vector<16x10xf32>,
    return
  }
  func.func @transform_0(%arg0: i32) -> (i32, i32) {
    %c0_i32 = arith.constant 0 : i32
    %c0_i32_0 = arith.constant 0 : i32
    return %arg0, %c0_i32 : i32, i32
  }
  func.func @transform_1(%arg0: i32) -> (i32, i32) {
    %c0_i32 = arith.constant 0 : i32
    %c0_i32_0 = arith.constant 0 : i32
    %c0_i32_1 = arith.constant 0 : i32
    return %c0_i32, %c0_i32_0 : i32, i32
  }
  func.func @transform_2(%arg0: i32) -> (i32, i32) {
    %c0_i32 = arith.constant 0 : i32
    %c0_i32_0 = arith.constant 0 : i32
    %c0_i32_1 = arith.constant 0 : i32
    return %c0_i32, %c0_i32_0 : i32, i32
  }
  func.func @transform_3(%arg0: i32) -> (i32, i32) {
    %c0_i32 = arith.constant 0 : i32
    %c0_i32_0 = arith.constant 0 : i32
    %c0_i32_1 = arith.constant 0 : i32
    return %c0_i32, %c0_i32_0 : i32, i32
  }
  func.func @transform_4(%arg0: i32) -> (i32, i32) {
    %c0_i32 = arith.constant 0 : i32
    %c0_i32_0 = arith.constant 0 : i32
    %c0_i32_1 = arith.constant 0 : i32
    return %c0_i32, %c0_i32_0 : i32, i32
  }
  func.func @transform_5(%arg0: i32) -> (i32, i32) {
    %c0_i32 = arith.constant 0 : i32
    %c0_i32_0 = arith.constant 0 : i32
    %c0_i32_1 = arith.constant 0 : i32
    return %c0_i32, %c0_i32_0 : i32, i32
  }
  func.func @transform_6(%arg0: i32) -> (i32, i32) {
    %c0_i32 = arith.constant 0 : i32
    %c0_i32_0 = arith.constant 0 : i32
    %c0_i32_1 = arith.constant 0 : i32
    return %c0_i32, %c0_i32_0 : i32, i32
  }
  func.func @transform_7(%arg0: i32) -> (i32, i32) {
    %c0_i32 = arith.constant 0 : i32
    %c0_i32_0 = arith.constant 0 : i32
    %c0_i32_1 = arith.constant 0 : i32
    return %c0_i32, %c0_i32_0 : i32, i32
  }
  func.func @transform_8(%arg0: i32) -> (i32, i32) {
    %c0_i32 = arith.constant 0 : i32
    %c0_i32_0 = arith.constant 0 : i32
    %c0_i32_1 = arith.constant 0 : i32
    return %c0_i32, %c0_i32_0 : i32, i32
  }
  func.func @transform_9(%arg0: i32) -> (i32, i32) {
    %c0_i32 = arith.constant 0 : i32
    %c0_i32_0 = arith.constant 0 : i32
    return %arg0, %c0_i32 : i32, i32
  }
}

</mosaic_0001>

<llo_original>
// kernel: tpu_custom_call.1
$region0: #{tpu_custom_call.1}
  #allocation0 [shape = 'u32[]', space=smem, size = 0x4, offset = 0x4, fixed_abs, tag = 'smem constant byte address 0x4 - core index']
  #allocation1 [shape = 'u32[144,128]{1,0:T(1,128)}', space=vmem, size = 0x12000, scoped, tag = 'internal scratch']
  %s0 = inlined_call_operand.hbm [shape: bf16[16,784], index: 0, kind: input, shape index: {}]
  %s1 = inlined_call_operand.hbm [shape: bf16[784,256], index: 1, kind: input, shape index: {}]
  %s2 = inlined_call_operand.vmem [shape: f32[1,256], index: 2, kind: input, shape index: {}]
  %s3 = inlined_call_operand.vmem [shape: bf16[256,128], index: 3, kind: input, shape index: {}]
  %s4 = inlined_call_operand.vmem [shape: f32[1,128], index: 4, kind: input, shape index: {}]
  %s5 = inlined_call_operand.vmem [shape: bf16[128,64], index: 5, kind: input, shape index: {}]
  %s6 = inlined_call_operand.vmem [shape: f32[1,64], index: 6, kind: input, shape index: {}]
  %s7 = inlined_call_operand.vmem [shape: bf16[64,10], index: 7, kind: input, shape index: {}]
  %s8 = inlined_call_operand.vmem [shape: f32[1,10], index: 8, kind: input, shape index: {}]
  %s9 = inlined_call_operand.hbm [shape: f32[16,10], index: 9, kind: output, shape index: {}]
  %s10 = sld [smem:[#allocation0]]
  $region54: #{tpu_custom_call.1} parent=0
    _
  %s12 = ssub.s32 1, %s10
  %s13 = scalar_select 0, %s12, %s10
  $region1: #{tpu_custom_call.1} parent=0
    #allocation2 [shape = 'u8[28672]{0}', space=vmem, size = 0x7000, scoped, tag = 'input window, operand 0, single buffered']
    #allocation3 [shape = 's32[1]{0}', space=sflag, size = 0x4, scoped, tag = 'scoped memory for tpu_custom_call.1']
    #allocation4 [shape = 's32[1]{0}', space=sflag, size = 0x4, scoped, tag = 'scoped memory for tpu_custom_call.1']
    #allocation5 [shape = 'u8[401408]{0}', space=vmem, size = 0x62000, scoped, tag = 'input window, operand 1, single buffered']
    #allocation6 [shape = 's32[1]{0}', space=sflag, size = 0x4, scoped, tag = 'scoped memory for tpu_custom_call.1']
    #allocation7 [shape = 'u8[8192]{0}', space=vmem, size = 0x2000, scoped, tag = 'output window, operand 0, single buffered']
    %14 = vsyncpa [#allocation3], 0
    %15 = vsyncpa [#allocation6], 0
    %16 = vsyncpa [#allocation4], 0
    // Predicated region
    $region2: #{tpu_custom_call.1} parent=1 // pred_check
      _
    $region3: #{tpu_custom_call.1} parent=1 // pred_check_branch
      %18 = sbr.rel (0) target = $region5
    $region4: #{tpu_custom_call.1} parent=1 // pred_region
      %s20 = ssub.s32 896, 896
      %21 = vsyncadd [#allocation3], %s20
      %s22 = sshll.u32 [#allocation2], 4
      %s23 = int_to_ptr.vmem [resolvable:$true] %s22
      %28 = dma.hbm_to_vmem [thread:$0]  %s0, 896, %s23, [#allocation3], 448, 448, 28
    $region5: #{tpu_custom_call.1} parent=1 // pred_fallthru
      _
    // Predicated region
    $region6: #{tpu_custom_call.1} parent=1 // pred_check
      _
    $region7: #{tpu_custom_call.1} parent=1 // pred_check_branch
      %30 = sbr.rel (0) target = $region9
    $region8: #{tpu_custom_call.1} parent=1 // pred_region
      %s32 = ssub.s32 12544, 12544
      %33 = vsyncadd [#allocation6], %s32
      %s34 = sshll.u32 [#allocation5], 4
      %s35 = int_to_ptr.vmem [resolvable:$true] %s34
      %40 = dma.hbm_to_vmem [thread:$0]  %s1, 12544, %s35, [#allocation6], 128, 128, 8
    $region9: #{tpu_custom_call.1} parent=1 // pred_fallthru
      _
    // Predicated region
    $region10: #{tpu_custom_call.1} parent=1 // pred_check
      _
    $region11: #{tpu_custom_call.1} parent=1 // pred_check_branch
      %42 = sbr.rel (0) target = $region13
    $region12: #{tpu_custom_call.1} parent=1 // pred_region
      _
    $region13: #{tpu_custom_call.1} parent=1 // pred_fallthru
      _
    // Predicated region
    $region14: #{tpu_custom_call.1} parent=1 // pred_check
      _
    $region15: #{tpu_custom_call.1} parent=1 // pred_check_branch
      %44 = sbr.rel (0) target = $region17
    $region16: #{tpu_custom_call.1} parent=1 // pred_region
      _
    $region17: #{tpu_custom_call.1} parent=1 // pred_fallthru
      _
    // Predicated region
    $region18: #{tpu_custom_call.1} parent=1 // pred_check
      _
    $region19: #{tpu_custom_call.1} parent=1 // pred_check_branch
      %46 = sbr.rel (0) target = $region21
    $region20: #{tpu_custom_call.1} parent=1 // pred_region
      _
    $region21: #{tpu_custom_call.1} parent=1 // pred_fallthru
      _
    // Predicated region
    $region22: #{tpu_custom_call.1} parent=1 // pred_check
      _
    $region23: #{tpu_custom_call.1} parent=1 // pred_check_branch
      %48 = sbr.rel (0) target = $region25
    $region24: #{tpu_custom_call.1} parent=1 // pred_region
      _
    $region25: #{tpu_custom_call.1} parent=1 // pred_fallthru
      _
    // Predicated region
    $region26: #{tpu_custom_call.1} parent=1 // pred_check
      _
    $region27: #{tpu_custom_call.1} parent=1 // pred_check_branch
      %50 = sbr.rel (0) target = $region29
    $region28: #{tpu_custom_call.1} parent=1 // pred_region
      _
    $region29: #{tpu_custom_call.1} parent=1 // pred_fallthru
      _
    // Predicated region
    $region30: #{tpu_custom_call.1} parent=1 // pred_check
      _
    $region31: #{tpu_custom_call.1} parent=1 // pred_check_branch
      %52 = sbr.rel (0) target = $region33
    $region32: #{tpu_custom_call.1} parent=1 // pred_region
      _
    $region33: #{tpu_custom_call.1} parent=1 // pred_fallthru
      _
    // Predicated region
    $region34: #{tpu_custom_call.1} parent=1 // pred_check
      _
    $region35: #{tpu_custom_call.1} parent=1 // pred_check_branch
      %54 = sbr.rel (0) target = $region37
    $region36: #{tpu_custom_call.1} parent=1 // pred_region
      _
    $region37: #{tpu_custom_call.1} parent=1 // pred_fallthru
      _
    // Predicated region
    $region38: #{tpu_custom_call.1} parent=1 // pred_check
      _
    $region39: #{tpu_custom_call.1} parent=1 // pred_check_branch
      %56 = sbr.rel (0) target = $region41
    $region40: #{tpu_custom_call.1} parent=1 // pred_region
      %57 = dma.done [#allocation3], 896
    $region41: #{tpu_custom_call.1} parent=1 // pred_fallthru
      _
    // Predicated region
    $region42: #{tpu_custom_call.1} parent=1 // pred_check
      _
    $region43: #{tpu_custom_call.1} parent=1 // pred_check_branch
      %59 = sbr.rel (0) target = $region45
    $region44: #{tpu_custom_call.1} parent=1 // pred_region
      %60 = dma.done [#allocation6], 12544
    $region45: #{tpu_custom_call.1} parent=1 // pred_fallthru
      _
    %v62 = vld [vmem:[#allocation2] sm:$0xff]
    %v63 = vld [vmem:[#allocation2 + $0x8] sm:$0xff]
    %v64 = vld [vmem:[#allocation2 + $0x10] sm:$0xff]
    %v65 = vld [vmem:[#allocation2 + $0x18] sm:$0xf]
    %v66 = vld [vmem:[#allocation2 + $0x1c] sm:$0xff]
    %v67 = vld [vmem:[#allocation2 + $0x24] sm:$0xff]
    %v68 = vld [vmem:[#allocation2 + $0x2c] sm:$0xff]
    %v69 = vld [vmem:[#allocation2 + $0x34] sm:$0xf]
    %v70 = vld [vmem:[#allocation5] sm:$0xff]
    %v71 = vld [vmem:[#allocation5 + $0x8] sm:$0xff]
    %v72 = vld [vmem:[#allocation5 + $0x10] sm:$0xff]
    %v73 = vld [vmem:[#allocation5 + $0x18] sm:$0xff]
    %v74 = vld [vmem:[#allocation5 + $0x20] sm:$0xff]
    %v75 = vld [vmem:[#allocation5 + $0x28] sm:$0xff]
    %v76 = vld [vmem:[#allocation5 + $0x30] sm:$0xff]
    %v77 = vld [vmem:[#allocation5 + $0x38] sm:$0xff]
    %v78 = vld [vmem:[#allocation5 + $0x40] sm:$0xff]
    %v79 = vld [vmem:[#allocation5 + $0x48] sm:$0xff]
    %v80 = vld [vmem:[#allocation5 + $0x50] sm:$0xff]
    %v81 = vld [vmem:[#allocation5 + $0x58] sm:$0xff]
    %v82 = vld [vmem:[#allocation5 + $0x60] sm:$0xff]
    %v83 = vld [vmem:[#allocation5 + $0x68] sm:$0xff]
    %v84 = vld [vmem:[#allocation5 + $0x70] sm:$0xff]
    %v85 = vld [vmem:[#allocation5 + $0x78] sm:$0xff]
    %v86 = vld [vmem:[#allocation5 + $0x80] sm:$0xff]
    %v87 = vld [vmem:[#allocation5 + $0x88] sm:$0xff]
    %v88 = vld [vmem:[#allocation5 + $0x90] sm:$0xff]
    %v89 = vld [vmem:[#allocation5 + $0x98] sm:$0xff]
    %v90 = vld [vmem:[#allocation5 + $0xa0] sm:$0xff]
    %v91 = vld [vmem:[#allocation5 + $0xa8] sm:$0xff]
    %v92 = vld [vmem:[#allocation5 + $0xb0] sm:$0xff]
    %v93 = vld [vmem:[#allocation5 + $0xb8] sm:$0xff]
    %v94 = vld [vmem:[#allocation5 + $0xc0] sm:$0xff]
    %v95 = vld [vmem:[#allocation5 + $0xc8] sm:$0xff]
    %v96 = vld [vmem:[#allocation5 + $0xd0] sm:$0xff]
    %v97 = vld [vmem:[#allocation5 + $0xd8] sm:$0xff]
    %v98 = vld [vmem:[#allocation5 + $0xe0] sm:$0xff]
    %v99 = vld [vmem:[#allocation5 + $0xe8] sm:$0xff]
    %v100 = vld [vmem:[#allocation5 + $0xf0] sm:$0xff]
    %v101 = vld [vmem:[#allocation5 + $0xf8] sm:$0xff]
    %v102 = vld [vmem:[#allocation5 + $0x100] sm:$0xff]
    %v103 = vld [vmem:[#allocation5 + $0x108] sm:$0xff]
    %v104 = vld [vmem:[#allocation5 + $0x110] sm:$0xff]
    %v105 = vld [vmem:[#allocation5 + $0x118] sm:$0xff]
    %v106 = vld [vmem:[#allocation5 + $0x120] sm:$0xff]
    %v107 = vld [vmem:[#allocation5 + $0x128] sm:$0xff]
    %v108 = vld [vmem:[#allocation5 + $0x130] sm:$0xff]
    %v109 = vld [vmem:[#allocation5 + $0x138] sm:$0xff]
    %v110 = vld [vmem:[#allocation5 + $0x140] sm:$0xff]
    %v111 = vld [vmem:[#allocation5 + $0x148] sm:$0xff]
    %v112 = vld [vmem:[#allocation5 + $0x150] sm:$0xff]
    %v113 = vld [vmem:[#allocation5 + $0x158] sm:$0xff]
    %v114 = vld [vmem:[#allocation5 + $0x160] sm:$0xff]
    %v115 = vld [vmem:[#allocation5 + $0x168] sm:$0xff]
    %v116 = vld [vmem:[#allocation5 + $0x170] sm:$0xff]
    %v117 = vld [vmem:[#allocation5 + $0x178] sm:$0xff]
    %v118 = vld [vmem:[#allocation5 + $0x180] sm:$0xff]
    %v119 = vld [vmem:[#allocation5 + $0x188] sm:$0xff]
    %v120 = vld [vmem:[#allocation5 + $0x190] sm:$0xff]
    %v121 = vld [vmem:[#allocation5 + $0x198] sm:$0xff]
    %v122 = vld [vmem:[#allocation5 + $0x1a0] sm:$0xff]
    %v123 = vld [vmem:[#allocation5 + $0x1a8] sm:$0xff]
    %v124 = vld [vmem:[#allocation5 + $0x1b0] sm:$0xff]
    %v125 = vld [vmem:[#allocation5 + $0x1b8] sm:$0xff]
    %v126 = vld [vmem:[#allocation5 + $0x1c0] sm:$0xff]
    %v127 = vld [vmem:[#allocation5 + $0x1c8] sm:$0xff]
    %v128 = vld [vmem:[#allocation5 + $0x1d0] sm:$0xff]
    %v129 = vld [vmem:[#allocation5 + $0x1d8] sm:$0xff]
    %v130 = vld [vmem:[#allocation5 + $0x1e0] sm:$0xff]
    %v131 = vld [vmem:[#allocation5 + $0x1e8] sm:$0xff]
    %v132 = vld [vmem:[#allocation5 + $0x1f0] sm:$0xff]
    %v133 = vld [vmem:[#allocation5 + $0x1f8] sm:$0xff]
    %v134 = vld [vmem:[#allocation5 + $0x200] sm:$0xff]
    %v135 = vld [vmem:[#allocation5 + $0x208] sm:$0xff]
    %v136 = vld [vmem:[#allocation5 + $0x210] sm:$0xff]
    %v137 = vld [vmem:[#allocation5 + $0x218] sm:$0xff]
    %v138 = vld [vmem:[#allocation5 + $0x220] sm:$0xff]
    %v139 = vld [vmem:[#allocation5 + $0x228] sm:$0xff]
    %v140 = vld [vmem:[#allocation5 + $0x230] sm:$0xff]
    %v141 = vld [vmem:[#allocation5 + $0x238] sm:$0xff]
    %v142 = vld [vmem:[#allocation5 + $0x240] sm:$0xff]
    %v143 = vld [vmem:[#allocation5 + $0x248] sm:$0xff]
    %v144 = vld [vmem:[#allocation5 + $0x250] sm:$0xff]
    %v145 = vld [vmem:[#allocation5 + $0x258] sm:$0xff]
    %v146 = vld [vmem:[#allocation5 + $0x260] sm:$0xff]
    %v147 = vld [vmem:[#allocation5 + $0x268] sm:$0xff]
    %v148 = vld [vmem:[#allocation5 + $0x270] sm:$0xff]
    %v149 = vld [vmem:[#allocation5 + $0x278] sm:$0xff]
    %v150 = vld [vmem:[#allocation5 + $0x280] sm:$0xff]
    %v151 = vld [vmem:[#allocation5 + $0x288] sm:$0xff]
    %v152 = vld [vmem:[#allocation5 + $0x290] sm:$0xff]
    %v153 = vld [vmem:[#allocation5 + $0x298] sm:$0xff]
    %v154 = vld [vmem:[#allocation5 + $0x2a0] sm:$0xff]
    %v155 = vld [vmem:[#allocation5 + $0x2a8] sm:$0xff]
    %v156 = vld [vmem:[#allocation5 + $0x2b0] sm:$0xff]
    %v157 = vld [vmem:[#allocation5 + $0x2b8] sm:$0xff]
    %v158 = vld [vmem:[#allocation5 + $0x2c0] sm:$0xff]
    %v159 = vld [vmem:[#allocation5 + $0x2c8] sm:$0xff]
    %v160 = vld [vmem:[#allocation5 + $0x2d0] sm:$0xff]
    %v161 = vld [vmem:[#allocation5 + $0x2d8] sm:$0xff]
    %v162 = vld [vmem:[#allocation5 + $0x2e0] sm:$0xff]
    %v163 = vld [vmem:[#allocation5 + $0x2e8] sm:$0xff]
    %v164 = vld [vmem:[#allocation5 + $0x2f0] sm:$0xff]
    %v165 = vld [vmem:[#allocation5 + $0x2f8] sm:$0xff]
    %v166 = vld [vmem:[#allocation5 + $0x300] sm:$0xff]
    %v167 = vld [vmem:[#allocation5 + $0x308] sm:$0xff]
    %v168 = vld [vmem:[%s2] sm:$0x3]
    %v170 = vlaneseq
    %v171 = vshrl.u32 %v170, 7
    %v172 = vsub.s32 0, %v171
    %v173 = vrot.slane %v168, %v172
    %v174 = vlaneseq
    %v175 = vshrl.u32 %v174, 7
    %v176 = vsub.s32 1, %v175
    %v177 = vrot.slane %v168, %v176
    %v188 = vunpack.c.l.b16 %v62
    %v189 = vunpack.c.h.b16 %v62
    %v190 = vunpack.c.l.b16 %v63
    %v191 = vunpack.c.h.b16 %v63
    %v192 = vunpack.c.l.b16 %v64
    %v193 = vunpack.c.h.b16 %v64
    %v194 = vunpack.c.l.b16 %v65
    %v195 = vunpack.c.l.b16 %v66
    %v196 = vunpack.c.h.b16 %v66
    %v197 = vunpack.c.l.b16 %v67
    %v198 = vunpack.c.h.b16 %v67
    %v199 = vunpack.c.l.b16 %v68
    %v200 = vunpack.c.h.b16 %v68
    %v201 = vunpack.c.l.b16 %v69
    %v202 = vpack.c.b16 %v195, %v188
    %v203 = vpack.c.b16 %v196, %v189
    %v204 = vpack.c.b16 %v197, %v190
    %v205 = vpack.c.b16 %v198, %v191
    %v206 = vpack.c.b16 %v199, %v192
    %v207 = vpack.c.b16 %v200, %v193
    %v208 = vpack.c.b16 %v201, %v194
    %v313 = vunpack.c.l.b16 %v70
    %v314 = vunpack.c.h.b16 %v70
    %v315 = vunpack.c.l.b16 %v71
    %v316 = vunpack.c.h.b16 %v71
    %v317 = vunpack.c.l.b16 %v72
    %v318 = vunpack.c.h.b16 %v72
    %v319 = vunpack.c.l.b16 %v73
    %v320 = vunpack.c.h.b16 %v73
    %v321 = vunpack.c.l.b16 %v74
    %v322 = vunpack.c.h.b16 %v74
    %v323 = vunpack.c.l.b16 %v75
    %v324 = vunpack.c.h.b16 %v75
    %v325 = vunpack.c.l.b16 %v76
    %v326 = vunpack.c.h.b16 %v76
    %v327 = vunpack.c.l.b16 %v77
    %v328 = vunpack.c.h.b16 %v77
    %v329 = vunpack.c.l.b16 %v78
    %v330 = vunpack.c.h.b16 %v78
    %v331 = vunpack.c.l.b16 %v79
    %v332 = vunpack.c.h.b16 %v79
    %v333 = vunpack.c.l.b16 %v80
    %v334 = vunpack.c.h.b16 %v80
    %v335 = vunpack.c.l.b16 %v81
    %v336 = vunpack.c.h.b16 %v81
    %v337 = vunpack.c.l.b16 %v82
    %v338 = vunpack.c.h.b16 %v82
    %v339 = vunpack.c.l.b16 %v83
    %v340 = vunpack.c.h.b16 %v83
    %v341 = vunpack.c.l.b16 %v84
    %v342 = vunpack.c.h.b16 %v84
    %v343 = vunpack.c.l.b16 %v85
    %v344 = vunpack.c.h.b16 %v85
    %v345 = vunpack.c.l.b16 %v86
    %v346 = vunpack.c.h.b16 %v86
    %v347 = vunpack.c.l.b16 %v87
    %v348 = vunpack.c.h.b16 %v87
    %v349 = vunpack.c.l.b16 %v88
    %v350 = vunpack.c.h.b16 %v88
    %v351 = vunpack.c.l.b16 %v89
    %v352 = vunpack.c.h.b16 %v89
    %v353 = vunpack.c.l.b16 %v90
    %v354 = vunpack.c.h.b16 %v90
    %v355 = vunpack.c.l.b16 %v91
    %v356 = vunpack.c.h.b16 %v91
    %v357 = vunpack.c.l.b16 %v92
    %v358 = vunpack.c.h.b16 %v92
    %v359 = vunpack.c.l.b16 %v93
    %v360 = vunpack.c.h.b16 %v93
    %v361 = vunpack.c.l.b16 %v94
    %v362 = vunpack.c.h.b16 %v94
    %v363 = vunpack.c.l.b16 %v95
    %v364 = vunpack.c.h.b16 %v95
    %v365 = vunpack.c.l.b16 %v96
    %v366 = vunpack.c.h.b16 %v96
    %v367 = vunpack.c.l.b16 %v97
    %v368 = vunpack.c.h.b16 %v97
    %v369 = vunpack.c.l.b16 %v98
    %v370 = vunpack.c.h.b16 %v98
    %v371 = vunpack.c.l.b16 %v99
    %v372 = vunpack.c.h.b16 %v99
    %v373 = vunpack.c.l.b16 %v100
    %v374 = vunpack.c.h.b16 %v100
    %v375 = vunpack.c.l.b16 %v101
    %v376 = vunpack.c.h.b16 %v101
    %v377 = vunpack.c.l.b16 %v102
    %v378 = vunpack.c.h.b16 %v102
    %v379 = vunpack.c.l.b16 %v103
    %v380 = vunpack.c.h.b16 %v103
    %v381 = vunpack.c.l.b16 %v104
    %v382 = vunpack.c.h.b16 %v104
    %v383 = vunpack.c.l.b16 %v105
    %v384 = vunpack.c.h.b16 %v105
    %v385 = vunpack.c.l.b16 %v106
    %v386 = vunpack.c.h.b16 %v106
    %v387 = vunpack.c.l.b16 %v107
    %v388 = vunpack.c.h.b16 %v107
    %v389 = vunpack.c.l.b16 %v108
    %v390 = vunpack.c.h.b16 %v108
    %v391 = vunpack.c.l.b16 %v109
    %v392 = vunpack.c.h.b16 %v109
    %v393 = vunpack.c.l.b16 %v110
    %v394 = vunpack.c.h.b16 %v110
    %v395 = vunpack.c.l.b16 %v111
    %v396 = vunpack.c.h.b16 %v111
    %v397 = vunpack.c.l.b16 %v112
    %v398 = vunpack.c.h.b16 %v112
    %v399 = vunpack.c.l.b16 %v113
    %v400 = vunpack.c.h.b16 %v113
    %v401 = vunpack.c.l.b16 %v114
    %v402 = vunpack.c.h.b16 %v114
    %v403 = vunpack.c.l.b16 %v115
    %v404 = vunpack.c.h.b16 %v115
    %v405 = vunpack.c.l.b16 %v116
    %v406 = vunpack.c.h.b16 %v116
    %v407 = vunpack.c.l.b16 %v117
    %v408 = vunpack.c.h.b16 %v117
    %v409 = vunpack.c.l.b16 %v118
    %v410 = vunpack.c.h.b16 %v118
    %v411 = vunpack.c.l.b16 %v119
    %v412 = vunpack.c.h.b16 %v119
    %v413 = vunpack.c.l.b16 %v120
    %v414 = vunpack.c.h.b16 %v120
    %v415 = vunpack.c.l.b16 %v121
    %v416 = vunpack.c.h.b16 %v121
    %v417 = vunpack.c.l.b16 %v122
    %v418 = vunpack.c.h.b16 %v122
    %v419 = vunpack.c.l.b16 %v123
    %v420 = vunpack.c.h.b16 %v123
    %v421 = vunpack.c.l.b16 %v124
    %v422 = vunpack.c.h.b16 %v124
    %v423 = vunpack.c.l.b16 %v125
    %v424 = vunpack.c.h.b16 %v125
    %v425 = vunpack.c.l.b16 %v126
    %v426 = vunpack.c.h.b16 %v126
    %v427 = vunpack.c.l.b16 %v127
    %v428 = vunpack.c.h.b16 %v127
    %v429 = vunpack.c.l.b16 %v128
    %v430 = vunpack.c.h.b16 %v128
    %v431 = vunpack.c.l.b16 %v129
    %v432 = vunpack.c.h.b16 %v129
    %v433 = vunpack.c.l.b16 %v130
    %v434 = vunpack.c.h.b16 %v130
    %v435 = vunpack.c.l.b16 %v131
    %v436 = vunpack.c.h.b16 %v131
    %v437 = vunpack.c.l.b16 %v132
    %v438 = vunpack.c.h.b16 %v132
    %v439 = vunpack.c.l.b16 %v133
    %v440 = vunpack.c.h.b16 %v133
    %v441 = vunpack.c.l.b16 %v134
    %v442 = vunpack.c.h.b16 %v134
    %v443 = vunpack.c.l.b16 %v135
    %v444 = vunpack.c.h.b16 %v135
    %v445 = vunpack.c.l.b16 %v136
    %v446 = vunpack.c.h.b16 %v136
    %v447 = vunpack.c.l.b16 %v137
    %v448 = vunpack.c.h.b16 %v137
    %v449 = vunpack.c.l.b16 %v138
    %v450 = vunpack.c.h.b16 %v138
    %v451 = vunpack.c.l.b16 %v139
    %v452 = vunpack.c.h.b16 %v139
    %v453 = vunpack.c.l.b16 %v140
    %v454 = vunpack.c.h.b16 %v140
    %v455 = vunpack.c.l.b16 %v141
    %v456 = vunpack.c.h.b16 %v141
    %v457 = vunpack.c.l.b16 %v142
    %v458 = vunpack.c.h.b16 %v142
    %v459 = vunpack.c.l.b16 %v143
    %v460 = vunpack.c.h.b16 %v143
    %v461 = vunpack.c.l.b16 %v144
    %v462 = vunpack.c.h.b16 %v144
    %v463 = vunpack.c.l.b16 %v145
    %v464 = vunpack.c.h.b16 %v145
    %v465 = vunpack.c.l.b16 %v146
    %v466 = vunpack.c.h.b16 %v146
    %v467 = vunpack.c.l.b16 %v147
    %v468 = vunpack.c.h.b16 %v147
    %v469 = vunpack.c.l.b16 %v148
    %v470 = vunpack.c.h.b16 %v148
    %v471 = vunpack.c.l.b16 %v149
    %v472 = vunpack.c.h.b16 %v149
    %v473 = vunpack.c.l.b16 %v150
    %v474 = vunpack.c.h.b16 %v150
    %v475 = vunpack.c.l.b16 %v151
    %v476 = vunpack.c.h.b16 %v151
    %v477 = vunpack.c.l.b16 %v152
    %v478 = vunpack.c.h.b16 %v152
    %v479 = vunpack.c.l.b16 %v153
    %v480 = vunpack.c.h.b16 %v153
    %v481 = vunpack.c.l.b16 %v154
    %v482 = vunpack.c.h.b16 %v154
    %v483 = vunpack.c.l.b16 %v155
    %v484 = vunpack.c.h.b16 %v155
    %v485 = vunpack.c.l.b16 %v156
    %v486 = vunpack.c.h.b16 %v156
    %v487 = vunpack.c.l.b16 %v157
    %v488 = vunpack.c.h.b16 %v157
    %v489 = vunpack.c.l.b16 %v158
    %v490 = vunpack.c.h.b16 %v158
    %v491 = vunpack.c.l.b16 %v159
    %v492 = vunpack.c.h.b16 %v159
    %v493 = vunpack.c.l.b16 %v160
    %v494 = vunpack.c.h.b16 %v160
    %v495 = vunpack.c.l.b16 %v161
    %v496 = vunpack.c.h.b16 %v161
    %v497 = vunpack.c.l.b16 %v162
    %v498 = vunpack.c.h.b16 %v162
    %v499 = vunpack.c.l.b16 %v163
    %v500 = vunpack.c.h.b16 %v163
    %v501 = vunpack.c.l.b16 %v164
    %v502 = vunpack.c.h.b16 %v164
    %v503 = vunpack.c.l.b16 %v165
    %v504 = vunpack.c.h.b16 %v165
    %v505 = vunpack.c.l.b16 %v166
    %v506 = vunpack.c.h.b16 %v166
    %v507 = vunpack.c.l.b16 %v167
    %v508 = vunpack.c.h.b16 %v167
    %v509 = vpack.c.b16 %v315, %v313
    %v510 = vpack.c.b16 %v316, %v314
    %v511 = vpack.c.b16 %v319, %v317
    %v512 = vpack.c.b16 %v320, %v318
    %v513 = vpack.c.b16 %v323, %v321
    %v514 = vpack.c.b16 %v324, %v322
    %v515 = vpack.c.b16 %v327, %v325
    %v516 = vpack.c.b16 %v328, %v326
    %v517 = vpack.c.b16 %v331, %v329
    %v518 = vpack.c.b16 %v332, %v330
    %v519 = vpack.c.b16 %v335, %v333
    %v520 = vpack.c.b16 %v336, %v334
    %v521 = vpack.c.b16 %v339, %v337
    %v522 = vpack.c.b16 %v340, %v338
    %v523 = vpack.c.b16 %v343, %v341
    %v524 = vpack.c.b16 %v344, %v342
    %v525 = vpack.c.b16 %v347, %v345
    %v526 = vpack.c.b16 %v348, %v346
    %v527 = vpack.c.b16 %v351, %v349
    %v528 = vpack.c.b16 %v352, %v350
    %v529 = vpack.c.b16 %v355, %v353
    %v530 = vpack.c.b16 %v356, %v354
    %v531 = vpack.c.b16 %v359, %v357
    %v532 = vpack.c.b16 %v360, %v358
    %v533 = vpack.c.b16 %v363, %v361
    %v534 = vpack.c.b16 %v364, %v362
    %v535 = vpack.c.b16 %v367, %v365
    %v536 = vpack.c.b16 %v368, %v366
    %v537 = vpack.c.b16 %v371, %v369
    %v538 = vpack.c.b16 %v372, %v370
    %v539 = vpack.c.b16 %v375, %v373
    %v540 = vpack.c.b16 %v376, %v374
    %v541 = vpack.c.b16 %v379, %v377
    %v542 = vpack.c.b16 %v380, %v378
    %v543 = vpack.c.b16 %v383, %v381
    %v544 = vpack.c.b16 %v384, %v382
    %v545 = vpack.c.b16 %v387, %v385
    %v546 = vpack.c.b16 %v388, %v386
    %v547 = vpack.c.b16 %v391, %v389
    %v548 = vpack.c.b16 %v392, %v390
    %v549 = vpack.c.b16 %v395, %v393
    %v550 = vpack.c.b16 %v396, %v394
    %v551 = vpack.c.b16 %v399, %v397
    %v552 = vpack.c.b16 %v400, %v398
    %v553 = vpack.c.b16 %v403, %v401
    %v554 = vpack.c.b16 %v404, %v402
    %v555 = vpack.c.b16 %v407, %v405
    %v556 = vpack.c.b16 %v408, %v406
    %v557 = vpack.c.b16 %v411, %v409
    %v558 = vpack.c.b16 %v412, %v410
    %v559 = vpack.c.b16 %v415, %v413
    %v560 = vpack.c.b16 %v416, %v414
    %v561 = vpack.c.b16 %v419, %v417
    %v562 = vpack.c.b16 %v420, %v418
    %v563 = vpack.c.b16 %v423, %v421
    %v564 = vpack.c.b16 %v424, %v422
    %v565 = vpack.c.b16 %v427, %v425
    %v566 = vpack.c.b16 %v428, %v426
    %v567 = vpack.c.b16 %v431, %v429
    %v568 = vpack.c.b16 %v432, %v430
    %v569 = vpack.c.b16 %v435, %v433
    %v570 = vpack.c.b16 %v436, %v434
    %v571 = vpack.c.b16 %v439, %v437
    %v572 = vpack.c.b16 %v440, %v438
    %v573 = vpack.c.b16 %v443, %v441
    %v574 = vpack.c.b16 %v444, %v442
    %v575 = vpack.c.b16 %v447, %v445
    %v576 = vpack.c.b16 %v448, %v446
    %v577 = vpack.c.b16 %v451, %v449
    %v578 = vpack.c.b16 %v452, %v450
    %v579 = vpack.c.b16 %v455, %v453
    %v580 = vpack.c.b16 %v456, %v454
    %v581 = vpack.c.b16 %v459, %v457
    %v582 = vpack.c.b16 %v460, %v458
    %v583 = vpack.c.b16 %v463, %v461
    %v584 = vpack.c.b16 %v464, %v462
    %v585 = vpack.c.b16 %v467, %v465
    %v586 = vpack.c.b16 %v468, %v466
    %v587 = vpack.c.b16 %v471, %v469
    %v588 = vpack.c.b16 %v472, %v470
    %v589 = vpack.c.b16 %v475, %v473
    %v590 = vpack.c.b16 %v476, %v474
    %v591 = vpack.c.b16 %v479, %v477
    %v592 = vpack.c.b16 %v480, %v478
    %v593 = vpack.c.b16 %v483, %v481
    %v594 = vpack.c.b16 %v484, %v482
    %v595 = vpack.c.b16 %v487, %v485
    %v596 = vpack.c.b16 %v488, %v486
    %v597 = vpack.c.b16 %v491, %v489
    %v598 = vpack.c.b16 %v492, %v490
    %v599 = vpack.c.b16 %v495, %v493
    %v600 = vpack.c.b16 %v496, %v494
    %v601 = vpack.c.b16 %v499, %v497
    %v602 = vpack.c.b16 %v500, %v498
    %v603 = vpack.c.b16 %v503, %v501
    %v604 = vpack.c.b16 %v504, %v502
    %v605 = vpack.c.b16 %v507, %v505
    %v606 = vpack.c.b16 %v508, %v506
    %vm705 = vcmask 130048
    %v707 = vsel %vm705, %v208, 0
    %709 = vmatprep.subr.bf16.mxu0 %v524
    %710 = vmatpush1.bf16.msra.mxu0 %v523
    %711 = vmatprep.subr.bf16.mxu0 %v522
    %712 = vmatpush1.bf16.msra.mxu0 %v521
    %713 = vmatprep.subr.bf16.mxu0 %v520
    %714 = vmatpush1.bf16.msra.mxu0 %v519
    %715 = vmatprep.subr.bf16.mxu0 %v518
    %716 = vmatpush1.bf16.msra.mxu0 %v517
    %717 = vmatprep.subr.bf16.mxu0 %v516
    %718 = vmatpush1.bf16.msra.mxu0 %v515
    %719 = vmatprep.subr.bf16.mxu0 %v514
    %720 = vmatpush1.bf16.msra.mxu0 %v513
    %721 = vmatprep.subr.bf16.mxu0 %v512
    %722 = vmatpush1.bf16.msra.mxu0 %v511
    %723 = vmatprep.subr.bf16.mxu0 %v510
    %724 = vmatpush1.bf16.msra.mxu0 %v509
    %725 = vmatprep.subr.bf16.mxu0 %v540
    %726 = vmatpush2.bf16.msra.mxu0 %v539
    %727 = vmatprep.subr.bf16.mxu0 %v538
    %728 = vmatpush2.bf16.msra.mxu0 %v537
    %729 = vmatprep.subr.bf16.mxu0 %v536
    %730 = vmatpush2.bf16.msra.mxu0 %v535
    %731 = vmatprep.subr.bf16.mxu0 %v534
    %732 = vmatpush2.bf16.msra.mxu0 %v533
    %733 = vmatprep.subr.bf16.mxu0 %v532
    %734 = vmatpush2.bf16.msra.mxu0 %v531
    %735 = vmatprep.subr.bf16.mxu0 %v530
    %736 = vmatpush2.bf16.msra.mxu0 %v529
    %737 = vmatprep.subr.bf16.mxu0 %v528
    %738 = vmatpush2.bf16.msra.mxu0 %v527
    %739 = vmatprep.subr.bf16.mxu0 %v526
    %740 = vmatpush2.bf16.msra.mxu0 %v525
    %741 = vmatprep.mubr.bf16.mxu0 %v203
    %742 = vmatmul.mubr.bf16.gmra.mxu0 %v202
    %v743 = vpop.f32.mrf.mxu0
    %v744 = vadd.f32 %v173, %v743
    %v745 = vpop.f32.mrf.mxu0
    %v746 = vadd.f32 %v177, %v745
    %v747 = vpop.f32.mrf.mxu0
    %v748 = vadd.f32 %v173, %v747
    %v749 = vpop.f32.mrf.mxu0
    %v750 = vadd.f32 %v177, %v749
    %751 = vdwg.mxu0
    %752 = vmatprep.subr.bf16.mxu0 %v556
    %753 = vmatpush1.bf16.msra.mxu0 %v555
    %754 = vmatprep.subr.bf16.mxu0 %v554
    %755 = vmatpush1.bf16.msra.mxu0 %v553
    %756 = vmatprep.subr.bf16.mxu0 %v552
    %757 = vmatpush1.bf16.msra.mxu0 %v551
    %758 = vmatprep.subr.bf16.mxu0 %v550
    %759 = vmatpush1.bf16.msra.mxu0 %v549
    %760 = vmatprep.subr.bf16.mxu0 %v548
    %761 = vmatpush1.bf16.msra.mxu0 %v547
    %762 = vmatprep.subr.bf16.mxu0 %v546
    %763 = vmatpush1.bf16.msra.mxu0 %v545
    %764 = vmatprep.subr.bf16.mxu0 %v544
    %765 = vmatpush1.bf16.msra.mxu0 %v543
    %766 = vmatprep.subr.bf16.mxu0 %v542
    %767 = vmatpush1.bf16.msra.mxu0 %v541
    %768 = vmatprep.subr.bf16.mxu0 %v572
    %769 = vmatpush2.bf16.msra.mxu0 %v571
    %770 = vmatprep.subr.bf16.mxu0 %v570
    %771 = vmatpush2.bf16.msra.mxu0 %v569
    %772 = vmatprep.subr.bf16.mxu0 %v568
    %773 = vmatpush2.bf16.msra.mxu0 %v567
    %774 = vmatprep.subr.bf16.mxu0 %v566
    %775 = vmatpush2.bf16.msra.mxu0 %v565
    %776 = vmatprep.subr.bf16.mxu0 %v564
    %777 = vmatpush2.bf16.msra.mxu0 %v563
    %778 = vmatprep.subr.bf16.mxu0 %v562
    %779 = vmatpush2.bf16.msra.mxu0 %v561
    %780 = vmatprep.subr.bf16.mxu0 %v560
    %781 = vmatpush2.bf16.msra.mxu0 %v559
    %782 = vmatprep.subr.bf16.mxu0 %v558
    %783 = vmatpush2.bf16.msra.mxu0 %v557
    %784 = vmatprep.mubr.bf16.mxu0 %v205
    %785 = vmatmul.mubr.bf16.gmra.mxu0 %v204
    %v786 = vpop.f32.mrf.mxu0
    %v787 = vadd.f32 %v744, %v786
    %v788 = vpop.f32.mrf.mxu0
    %v789 = vadd.f32 %v746, %v788
    %v790 = vpop.f32.mrf.mxu0
    %v791 = vadd.f32 %v748, %v790
    %v792 = vpop.f32.mrf.mxu0
    %v793 = vadd.f32 %v750, %v792
    %794 = vdwg.mxu0
    %795 = vmatprep.subr.bf16.mxu0 %v588
    %796 = vmatpush1.bf16.msra.mxu0 %v587
    %797 = vmatprep.subr.bf16.mxu0 %v586
    %798 = vmatpush1.bf16.msra.mxu0 %v585
    %799 = vmatprep.subr.bf16.mxu0 %v584
    %800 = vmatpush1.bf16.msra.mxu0 %v583
    %801 = vmatprep.subr.bf16.mxu0 %v582
    %802 = vmatpush1.bf16.msra.mxu0 %v581
    %803 = vmatprep.subr.bf16.mxu0 %v580
    %804 = vmatpush1.bf16.msra.mxu0 %v579
    %805 = vmatprep.subr.bf16.mxu0 %v578
    %806 = vmatpush1.bf16.msra.mxu0 %v577
    %807 = vmatprep.subr.bf16.mxu0 %v576
    %808 = vmatpush1.bf16.msra.mxu0 %v575
    %809 = vmatprep.subr.bf16.mxu0 %v574
    %810 = vmatpush1.bf16.msra.mxu0 %v573
    %811 = vmatprep.subr.bf16.mxu0 %v604
    %812 = vmatpush2.bf16.msra.mxu0 %v603
    %813 = vmatprep.subr.bf16.mxu0 %v602
    %814 = vmatpush2.bf16.msra.mxu0 %v601
    %815 = vmatprep.subr.bf16.mxu0 %v600
    %816 = vmatpush2.bf16.msra.mxu0 %v599
    %817 = vmatprep.subr.bf16.mxu0 %v598
    %818 = vmatpush2.bf16.msra.mxu0 %v597
    %819 = vmatprep.subr.bf16.mxu0 %v596
    %820 = vmatpush2.bf16.msra.mxu0 %v595
    %821 = vmatprep.subr.bf16.mxu0 %v594
    %822 = vmatpush2.bf16.msra.mxu0 %v593
    %823 = vmatprep.subr.bf16.mxu0 %v592
    %824 = vmatpush2.bf16.msra.mxu0 %v591
    %825 = vmatprep.subr.bf16.mxu0 %v590
    %826 = vmatpush2.bf16.msra.mxu0 %v589
    %827 = vmatprep.mubr.bf16.mxu0 %v207
    %828 = vmatmul.mubr.bf16.gmra.mxu0 %v206
    %v829 = vpop.f32.mrf.mxu0
    %v830 = vadd.f32 %v787, %v829
    %v831 = vpop.f32.mrf.mxu0
    %v832 = vadd.f32 %v789, %v831
    %v833 = vpop.f32.mrf.mxu0
    %v834 = vadd.f32 %v791, %v833
    %v835 = vpop.f32.mrf.mxu0
    %v836 = vadd.f32 %v793, %v835
    %837 = vdwg.mxu0
    %838 = vmatprep.subr.bf16.mxu0 0
    %839 = vmatpush1.bf16.msra.mxu0 0
    %840 = vmatprep.subr.bf16.mxu0 0
    %841 = vmatpush1.bf16.msra.mxu0 0
    %842 = vmatprep.subr.bf16.mxu0 0
    %843 = vmatpush1.bf16.msra.mxu0 0
    %844 = vmatprep.subr.bf16.mxu0 0
    %845 = vmatpush1.bf16.msra.mxu0 0
    %846 = vmatprep.subr.bf16.mxu0 0
    %847 = vmatpush1.bf16.msra.mxu0 0
    %848 = vmatprep.subr.bf16.mxu0 0
    %849 = vmatpush1.bf16.msra.mxu0 0
    %850 = vmatprep.subr.bf16.mxu0 0
    %851 = vmatpush1.bf16.msra.mxu0 0
    %852 = vmatprep.subr.bf16.mxu0 %v606
    %853 = vmatpush1.bf16.msra.mxu0 %v605
    %854 = vmatprep.subr.bf16.mxu0 0
    %855 = vmatpush2.bf16.msra.mxu0 0
    %856 = vmatprep.subr.bf16.mxu0 0
    %857 = vmatpush2.bf16.msra.mxu0 0
    %858 = vmatprep.subr.bf16.mxu0 0
    %859 = vmatpush2.bf16.msra.mxu0 0
    %860 = vmatprep.subr.bf16.mxu0 0
    %861 = vmatpush2.bf16.msra.mxu0 0
    %862 = vmatprep.subr.bf16.mxu0 0
    %863 = vmatpush2.bf16.msra.mxu0 0
    %864 = vmatprep.subr.bf16.mxu0 0
    %865 = vmatpush2.bf16.msra.mxu0 0
    %866 = vmatprep.subr.bf16.mxu0 0
    %867 = vmatpush2.bf16.msra.mxu0 0
    %868 = vmatprep.subr.bf16.mxu0 0
    %869 = vmatpush2.bf16.msra.mxu0 0
    %870 = vmatprep.mubr.bf16.mxu0 0
    %871 = vmatmul.mubr.bf16.gmra.mxu0 %v707
    %v872 = vpop.f32.mrf.mxu0
    %v873 = vadd.f32 %v830, %v872
    %v874 = vpop.f32.mrf.mxu0
    %v875 = vadd.f32 %v832, %v874
    %v876 = vpop.f32.mrf.mxu0
    %v877 = vadd.f32 %v834, %v876
    %v878 = vpop.f32.mrf.mxu0
    %v879 = vadd.f32 %v836, %v878
    %880 = vdwg.mxu0
    %v881 = vmax.f32 %v873, 0.0
    %v882 = vmax.f32 %v875, 0.0
    %v883 = vmax.f32 %v877, 0.0
    %v884 = vmax.f32 %v879, 0.0
    %v885 = vpack.c.bf16 %v883, %v881
    %v886 = vpack.c.bf16 %v884, %v882
    %v887 = vld [vmem:[%s3] sm:$0xf]
    %v888 = vld [vmem:[%s3 + $0x4] sm:$0xf]
    %v889 = vld [vmem:[%s3 + $0x8] sm:$0xf]
    %v890 = vld [vmem:[%s3 + $0xc] sm:$0xf]
    %v891 = vld [vmem:[%s3 + $0x10] sm:$0xf]
    %v892 = vld [vmem:[%s3 + $0x14] sm:$0xf]
    %v893 = vld [vmem:[%s3 + $0x18] sm:$0xf]
    %v894 = vld [vmem:[%s3 + $0x1c] sm:$0xf]
    %v895 = vld [vmem:[%s3 + $0x20] sm:$0xf]
    %v896 = vld [vmem:[%s3 + $0x24] sm:$0xf]
    %v897 = vld [vmem:[%s3 + $0x28] sm:$0xf]
    %v898 = vld [vmem:[%s3 + $0x2c] sm:$0xf]
    %v899 = vld [vmem:[%s3 + $0x30] sm:$0xf]
    %v900 = vld [vmem:[%s3 + $0x34] sm:$0xf]
    %v901 = vld [vmem:[%s3 + $0x38] sm:$0xf]
    %v902 = vld [vmem:[%s3 + $0x3c] sm:$0xf]
    %v903 = vld [vmem:[%s3 + $0x40] sm:$0xf]
    %v904 = vld [vmem:[%s3 + $0x44] sm:$0xf]
    %v905 = vld [vmem:[%s3 + $0x48] sm:$0xf]
    %v906 = vld [vmem:[%s3 + $0x4c] sm:$0xf]
    %v907 = vld [vmem:[%s3 + $0x50] sm:$0xf]
    %v908 = vld [vmem:[%s3 + $0x54] sm:$0xf]
    %v909 = vld [vmem:[%s3 + $0x58] sm:$0xf]
    %v910 = vld [vmem:[%s3 + $0x5c] sm:$0xf]
    %v911 = vld [vmem:[%s3 + $0x60] sm:$0xf]
    %v912 = vld [vmem:[%s3 + $0x64] sm:$0xf]
    %v913 = vld [vmem:[%s3 + $0x68] sm:$0xf]
    %v914 = vld [vmem:[%s3 + $0x6c] sm:$0xf]
    %v915 = vld [vmem:[%s3 + $0x70] sm:$0xf]
    %v916 = vld [vmem:[%s3 + $0x74] sm:$0xf]
    %v917 = vld [vmem:[%s3 + $0x78] sm:$0xf]
    %v918 = vld [vmem:[%s3 + $0x7c] sm:$0xf]
    %v919 = vld [vmem:[%s4] sm:$0x1]
    %v921 = vlaneseq
    %v922 = vshrl.u32 %v921, 7
    %v923 = vsub.s32 0, %v922
    %v924 = vrot.slane %v919, %v923
    %v958 = vunpack.c.l.b16 %v887
    %v959 = vunpack.c.l.b16 %v888
    %v960 = vunpack.c.l.b16 %v889
    %v961 = vunpack.c.l.b16 %v890
    %v962 = vunpack.c.l.b16 %v891
    %v963 = vunpack.c.l.b16 %v892
    %v964 = vunpack.c.l.b16 %v893
    %v965 = vunpack.c.l.b16 %v894
    %v966 = vunpack.c.l.b16 %v895
    %v967 = vunpack.c.l.b16 %v896
    %v968 = vunpack.c.l.b16 %v897
    %v969 = vunpack.c.l.b16 %v898
    %v970 = vunpack.c.l.b16 %v899
    %v971 = vunpack.c.l.b16 %v900
    %v972 = vunpack.c.l.b16 %v901
    %v973 = vunpack.c.l.b16 %v902
    %v974 = vunpack.c.l.b16 %v903
    %v975 = vunpack.c.l.b16 %v904
    %v976 = vunpack.c.l.b16 %v905
    %v977 = vunpack.c.l.b16 %v906
    %v978 = vunpack.c.l.b16 %v907
    %v979 = vunpack.c.l.b16 %v908
    %v980 = vunpack.c.l.b16 %v909
    %v981 = vunpack.c.l.b16 %v910
    %v982 = vunpack.c.l.b16 %v911
    %v983 = vunpack.c.l.b16 %v912
    %v984 = vunpack.c.l.b16 %v913
    %v985 = vunpack.c.l.b16 %v914
    %v986 = vunpack.c.l.b16 %v915
    %v987 = vunpack.c.l.b16 %v916
    %v988 = vunpack.c.l.b16 %v917
    %v989 = vunpack.c.l.b16 %v918
    %v990 = vpack.c.b16 %v959, %v958
    %v991 = vpack.c.b16 %v961, %v960
    %v992 = vpack.c.b16 %v963, %v962
    %v993 = vpack.c.b16 %v965, %v964
    %v994 = vpack.c.b16 %v967, %v966
    %v995 = vpack.c.b16 %v969, %v968
    %v996 = vpack.c.b16 %v971, %v970
    %v997 = vpack.c.b16 %v973, %v972
    %v998 = vpack.c.b16 %v975, %v974
    %v999 = vpack.c.b16 %v977, %v976
    %v1000 = vpack.c.b16 %v979, %v978
    %v1001 = vpack.c.b16 %v981, %v980
    %v1002 = vpack.c.b16 %v983, %v982
    %v1003 = vpack.c.b16 %v985, %v984
    %v1004 = vpack.c.b16 %v987, %v986
    %v1005 = vpack.c.b16 %v989, %v988
    %1022 = vmatprep.subr.bf16.mxu0 0
    %1023 = vmatpush1.bf16.msra.mxu0 %v997
    %1024 = vmatprep.subr.bf16.mxu0 0
    %1025 = vmatpush1.bf16.msra.mxu0 %v996
    %1026 = vmatprep.subr.bf16.mxu0 0
    %1027 = vmatpush1.bf16.msra.mxu0 %v995
    %1028 = vmatprep.subr.bf16.mxu0 0
    %1029 = vmatpush1.bf16.msra.mxu0 %v994
    %1030 = vmatprep.subr.bf16.mxu0 0
    %1031 = vmatpush1.bf16.msra.mxu0 %v993
    %1032 = vmatprep.subr.bf16.mxu0 0
    %1033 = vmatpush1.bf16.msra.mxu0 %v992
    %1034 = vmatprep.subr.bf16.mxu0 0
    %1035 = vmatpush1.bf16.msra.mxu0 %v991
    %1036 = vmatprep.subr.bf16.mxu0 0
    %1037 = vmatpush1.bf16.msra.mxu0 %v990
    %1038 = vmatprep.subr.bf16.mxu0 0
    %1039 = vmatpush2.bf16.msra.mxu0 %v1005
    %1040 = vmatprep.subr.bf16.mxu0 0
    %1041 = vmatpush2.bf16.msra.mxu0 %v1004
    %1042 = vmatprep.subr.bf16.mxu0 0
    %1043 = vmatpush2.bf16.msra.mxu0 %v1003
    %1044 = vmatprep.subr.bf16.mxu0 0
    %1045 = vmatpush2.bf16.msra.mxu0 %v1002
    %1046 = vmatprep.subr.bf16.mxu0 0
    %1047 = vmatpush2.bf16.msra.mxu0 %v1001
    %1048 = vmatprep.subr.bf16.mxu0 0
    %1049 = vmatpush2.bf16.msra.mxu0 %v1000
    %1050 = vmatprep.subr.bf16.mxu0 0
    %1051 = vmatpush2.bf16.msra.mxu0 %v999
    %1052 = vmatprep.subr.bf16.mxu0 0
    %1053 = vmatpush2.bf16.msra.mxu0 %v998
    %1054 = vmatprep.mubr.bf16.mxu0 %v886
    %1055 = vmatmul.mubr.bf16.gmra.mxu0 %v885
    %v1056 = vpop.f32.mrf.mxu0
    %v1057 = vadd.f32 %v924, %v1056
    %v1058 = vpop.f32.mrf.mxu0
    %v1059 = vpop.f32.mrf.mxu0
    %v1060 = vadd.f32 %v924, %v1059
    %v1061 = vpop.f32.mrf.mxu0
    %1062 = vdwg.mxu0
    %v1063 = vmax.f32 %v1057, 0.0
    %v1064 = vmax.f32 %v1060, 0.0
    %v1065 = vpack.c.bf16 %v1064, %v1063
    %v1066 = vld [vmem:[%s5] sm:$0xf]
    %v1067 = vld [vmem:[%s5 + $0x4] sm:$0xf]
    %v1068 = vld [vmem:[%s5 + $0x8] sm:$0xf]
    %v1069 = vld [vmem:[%s5 + $0xc] sm:$0xf]
    %v1070 = vld [vmem:[%s5 + $0x10] sm:$0xf]
    %v1071 = vld [vmem:[%s5 + $0x14] sm:$0xf]
    %v1072 = vld [vmem:[%s5 + $0x18] sm:$0xf]
    %v1073 = vld [vmem:[%s5 + $0x1c] sm:$0xf]
    %v1074 = vld [vmem:[%s5 + $0x20] sm:$0xf]
    %v1075 = vld [vmem:[%s5 + $0x24] sm:$0xf]
    %v1076 = vld [vmem:[%s5 + $0x28] sm:$0xf]
    %v1077 = vld [vmem:[%s5 + $0x2c] sm:$0xf]
    %v1078 = vld [vmem:[%s5 + $0x30] sm:$0xf]
    %v1079 = vld [vmem:[%s5 + $0x34] sm:$0xf]
    %v1080 = vld [vmem:[%s5 + $0x38] sm:$0xf]
    %v1081 = vld [vmem:[%s5 + $0x3c] sm:$0xf]
    %v1082 = vld [vmem:[%s6] sm:$0x1]
    %v1084 = vlaneseq
    %v1085 = vshrl.u32 %v1084, 7
    %v1086 = vsub.s32 0, %v1085
    %v1087 = vrot.slane %v1082, %v1086
    %v1105 = vunpack.c.l.b16 %v1066
    %v1106 = vunpack.c.l.b16 %v1067
    %v1107 = vunpack.c.l.b16 %v1068
    %v1108 = vunpack.c.l.b16 %v1069
    %v1109 = vunpack.c.l.b16 %v1070
    %v1110 = vunpack.c.l.b16 %v1071
    %v1111 = vunpack.c.l.b16 %v1072
    %v1112 = vunpack.c.l.b16 %v1073
    %v1113 = vunpack.c.l.b16 %v1074
    %v1114 = vunpack.c.l.b16 %v1075
    %v1115 = vunpack.c.l.b16 %v1076
    %v1116 = vunpack.c.l.b16 %v1077
    %v1117 = vunpack.c.l.b16 %v1078
    %v1118 = vunpack.c.l.b16 %v1079
    %v1119 = vunpack.c.l.b16 %v1080
    %v1120 = vunpack.c.l.b16 %v1081
    %v1121 = vpack.c.b16 %v1106, %v1105
    %v1122 = vpack.c.b16 %v1108, %v1107
    %v1123 = vpack.c.b16 %v1110, %v1109
    %v1124 = vpack.c.b16 %v1112, %v1111
    %v1125 = vpack.c.b16 %v1114, %v1113
    %v1126 = vpack.c.b16 %v1116, %v1115
    %v1127 = vpack.c.b16 %v1118, %v1117
    %v1128 = vpack.c.b16 %v1120, %v1119
    %1137 = vmatprep.subr.bf16.mxu0 0
    %1138 = vmatpush1.bf16.msra.mxu0 %v1128
    %1139 = vmatprep.subr.bf16.mxu0 0
    %1140 = vmatpush1.bf16.msra.mxu0 %v1127
    %1141 = vmatprep.subr.bf16.mxu0 0
    %1142 = vmatpush1.bf16.msra.mxu0 %v1126
    %1143 = vmatprep.subr.bf16.mxu0 0
    %1144 = vmatpush1.bf16.msra.mxu0 %v1125
    %1145 = vmatprep.subr.bf16.mxu0 0
    %1146 = vmatpush1.bf16.msra.mxu0 %v1124
    %1147 = vmatprep.subr.bf16.mxu0 0
    %1148 = vmatpush1.bf16.msra.mxu0 %v1123
    %1149 = vmatprep.subr.bf16.mxu0 0
    %1150 = vmatpush1.bf16.msra.mxu0 %v1122
    %1151 = vmatprep.subr.bf16.mxu0 0
    %1152 = vmatpush1.bf16.msra.mxu0 %v1121
    %1153 = vmatprep.subr.bf16.mxu0 0
    %1154 = vmatpush2.bf16.msra.mxu0 0
    %1155 = vmatprep.subr.bf16.mxu0 0
    %1156 = vmatpush2.bf16.msra.mxu0 0
    %1157 = vmatprep.subr.bf16.mxu0 0
    %1158 = vmatpush2.bf16.msra.mxu0 0
    %1159 = vmatprep.subr.bf16.mxu0 0
    %1160 = vmatpush2.bf16.msra.mxu0 0
    %1161 = vmatprep.subr.bf16.mxu0 0
    %1162 = vmatpush2.bf16.msra.mxu0 0
    %1163 = vmatprep.subr.bf16.mxu0 0
    %1164 = vmatpush2.bf16.msra.mxu0 0
    %1165 = vmatprep.subr.bf16.mxu0 0
    %1166 = vmatpush2.bf16.msra.mxu0 0
    %1167 = vmatprep.subr.bf16.mxu0 0
    %1168 = vmatpush2.bf16.msra.mxu0 0
    %1169 = vmatprep.mubr.bf16.mxu0 0
    %1170 = vmatmul.mubr.bf16.gmra.mxu0 %v1065
    %v1171 = vpop.f32.mrf.mxu0
    %v1172 = vadd.f32 %v1087, %v1171
    %v1173 = vpop.f32.mrf.mxu0
    %v1174 = vpop.f32.mrf.mxu0
    %v1175 = vadd.f32 %v1087, %v1174
    %v1176 = vpop.f32.mrf.mxu0
    %1177 = vdwg.mxu0
    %v1178 = vmax.f32 %v1172, 0.0
    %v1179 = vmax.f32 %v1175, 0.0
    %v1180 = vpack.c.bf16 %v1179, %v1178
    %v1181 = vld [vmem:[%s7] sm:$0xf]
    %v1182 = vld [vmem:[%s7 + $0x4] sm:$0xf]
    %v1183 = vld [vmem:[%s7 + $0x8] sm:$0xf]
    %v1184 = vld [vmem:[%s7 + $0xc] sm:$0xf]
    %v1185 = vld [vmem:[%s7 + $0x10] sm:$0xf]
    %v1186 = vld [vmem:[%s7 + $0x14] sm:$0xf]
    %v1187 = vld [vmem:[%s7 + $0x18] sm:$0xf]
    %v1188 = vld [vmem:[%s7 + $0x1c] sm:$0xf]
    %v1189 = vld [vmem:[%s8] sm:$0x1]
    %v1191 = vlaneseq
    %v1192 = vshrl.u32 %v1191, 7
    %v1193 = vsub.s32 0, %v1192
    %v1194 = vrot.slane %v1189, %v1193
    %v1204 = vunpack.c.l.b16 %v1181
    %v1205 = vunpack.c.l.b16 %v1182
    %v1206 = vunpack.c.l.b16 %v1183
    %v1207 = vunpack.c.l.b16 %v1184
    %v1208 = vunpack.c.l.b16 %v1185
    %v1209 = vunpack.c.l.b16 %v1186
    %v1210 = vunpack.c.l.b16 %v1187
    %v1211 = vunpack.c.l.b16 %v1188
    %v1212 = vpack.c.b16 %v1205, %v1204
    %v1213 = vpack.c.b16 %v1207, %v1206
    %v1214 = vpack.c.b16 %v1209, %v1208
    %v1215 = vpack.c.b16 %v1211, %v1210
    %vm1220 = vcmask 523264
    %v1222 = vsel %vm1220, %v1180, 0
    %1224 = vmatprep.subr.bf16.mxu0 0
    %1225 = vmatpush1.bf16.msra.mxu0 0
    %1226 = vmatprep.subr.bf16.mxu0 0
    %1227 = vmatpush1.bf16.msra.mxu0 0
    %1228 = vmatprep.subr.bf16.mxu0 0
    %1229 = vmatpush1.bf16.msra.mxu0 0
    %1230 = vmatprep.subr.bf16.mxu0 0
    %1231 = vmatpush1.bf16.msra.mxu0 0
    %1232 = vmatprep.subr.bf16.mxu0 0
    %1233 = vmatpush1.bf16.msra.mxu0 %v1215
    %1234 = vmatprep.subr.bf16.mxu0 0
    %1235 = vmatpush1.bf16.msra.mxu0 %v1214
    %1236 = vmatprep.subr.bf16.mxu0 0
    %1237 = vmatpush1.bf16.msra.mxu0 %v1213
    %1238 = vmatprep.subr.bf16.mxu0 0
    %1239 = vmatpush1.bf16.msra.mxu0 %v1212
    %1240 = vmatprep.subr.bf16.mxu0 0
    %1241 = vmatpush2.bf16.msra.mxu0 0
    %1242 = vmatprep.subr.bf16.mxu0 0
    %1243 = vmatpush2.bf16.msra.mxu0 0
    %1244 = vmatprep.subr.bf16.mxu0 0
    %1245 = vmatpush2.bf16.msra.mxu0 0
    %1246 = vmatprep.subr.bf16.mxu0 0
    %1247 = vmatpush2.bf16.msra.mxu0 0
    %1248 = vmatprep.subr.bf16.mxu0 0
    %1249 = vmatpush2.bf16.msra.mxu0 0
    %1250 = vmatprep.subr.bf16.mxu0 0
    %1251 = vmatpush2.bf16.msra.mxu0 0
    %1252 = vmatprep.subr.bf16.mxu0 0
    %1253 = vmatpush2.bf16.msra.mxu0 0
    %1254 = vmatprep.subr.bf16.mxu0 0
    %1255 = vmatpush2.bf16.msra.mxu0 0
    %1256 = vmatprep.mubr.bf16.mxu0 0
    %1257 = vmatmul.mubr.bf16.gmra.mxu0 %v1222
    %v1258 = vpop.f32.mrf.mxu0
    %v1259 = vadd.f32 %v1194, %v1258
    %v1260 = vpop.f32.mrf.mxu0
    %v1261 = vpop.f32.mrf.mxu0
    %v1262 = vadd.f32 %v1194, %v1261
    %v1263 = vpop.f32.mrf.mxu0
    %1264 = vdwg.mxu0
    %vm1265 = vcmask 80896
    %v1266 = vsel %vm1265, %v1259, -inf
    %1267 = vmax.xlane.f32.xlu0 %v1266
    %v1268 = vpop.xlane.xlu0 %1267
    %v1269 = vsel %vm1265, %v1262, -inf
    %1270 = vmax.xlane.f32.xlu0 %v1269
    %v1271 = vpop.xlane.xlu0 %1270
    %v1272 = vsub.f32 %v1259, %v1268
    %v1273 = vsub.f32 %v1262, %v1271
    %v1274 = vmul.f32 %v1272, 1.442695
    %v1275 = vpow.pop %v1274
    %v1276 = vmul.f32 %v1273, 1.442695
    %v1277 = vpow.pop %v1276
    %v1278 = vsel %vm1265, %v1275, 0.0
    %1279 = vadd.xlane.f32.xlu0 %v1278
    %v1280 = vpop.xlane.xlu0 %1279
    %v1281 = vsel %vm1265, %v1277, 0.0
    %1282 = vadd.xlane.f32.xlu0 %v1281
    %v1283 = vpop.xlane.xlu0 %1282
    %v1284 = vlog2.pop %v1280
    %v1285 = vmul.f32 %v1284, 0.6931472
    %v1286 = vlog2.pop %v1283
    %v1287 = vmul.f32 %v1286, 0.6931472
    %v1288 = vsub.f32 %v1272, %v1285
    %v1289 = vsub.f32 %v1273, %v1287
    %1290 = vst.msk [vmem:[#allocation7] sm:$0xff] %vm1265, %v1288
    %1291 = vst.msk [vmem:[#allocation7 + $0x8] sm:$0xff] %vm1265, %v1289
    // Predicated region
    $region46: #{tpu_custom_call.1} parent=1 // pred_check
      _
    $region47: #{tpu_custom_call.1} parent=1 // pred_check_branch
      %1293 = sbr.rel (0) target = $region49
    $region48: #{tpu_custom_call.1} parent=1 // pred_region
      %s1295 = ssub.s32 256, 256
      %1296 = vsyncadd [#allocation4], %s1295
      %s1297 = sshll.u32 [#allocation7], 4
      %s1298 = int_to_ptr.vmem [resolvable:$true] %s1297
      %1303 = dma.vmem_to_hbm [thread:$0]  %s1298, 256, %s9, [#allocation4], 128, 128, 8
    $region49: #{tpu_custom_call.1} parent=1 // pred_fallthru
      _
    // Predicated region
    $region50: #{tpu_custom_call.1} parent=1 // pred_check
      _
    $region51: #{tpu_custom_call.1} parent=1 // pred_check_branch
      %1305 = sbr.rel (0) target = $region53
    $region52: #{tpu_custom_call.1} parent=1 // pred_region
      %1306 = dma.done [#allocation4], 256
    $region53: #{tpu_custom_call.1} parent=1 // pred_fallthru
      _
    %1307 = vsyncpa [#allocation3], 1
    %1308 = vsyncpa [#allocation6], 1
    %1309 = vsyncpa [#allocation4], 1

</llo_original>
